<compile_context>
chip_gen: v5e
topology: v5e:2x2
jax: 0.10.0
libtpu: 0.0.40
codegen_flags: <defaults>
</compile_context>

<pallas_src>
import functools

import jax
import jax.numpy as jnp
from jax import lax
from jax.experimental import pallas as pl
from jax.experimental.pallas import tpu as pltpu

SIZE_H1 = 25
SIZE_H2 = 12
SIZE_H3 = 6
SIZE_H4 = 2

# 8-aligned sublane slots inside the packed (64, 1) bias buffer.
_B1_OFF, _B2_OFF, _B3_OFF, _B4_OFF = 0, 32, 48, 56
_BIAS_PACK = 64


def adult_mlp_kernel(x_ref, w1_ref, w2_ref, w3_ref, w4_ref, bias_ref, o_ref):
    """One batch tile.  Internally uses (features, batch) layout: batch on lanes."""
    x = x_ref[...].astype(w1_ref.dtype)            # (TB, F) -> bf16, cast in-kernel
    biases = bias_ref[...]                         # (64, 1) f32, 8-aligned slots

    # h1^T = W1 @ x^T : contract over the 13-wide feature axis of both operands
    # (Mosaic handles the small transpose; XLU slot is idle in this kernel).
    h1 = lax.dot_general(w1_ref[...], x, (((1,), (1,)), ((), ())),
                         preferred_element_type=jnp.float32)           # (25, TB)
    h1 = jnp.maximum(h1 + biases[_B1_OFF:_B1_OFF + SIZE_H1], 0.0)

    h2 = jnp.dot(w2_ref[...], h1.astype(w2_ref.dtype),
                 preferred_element_type=jnp.float32)                    # (12, TB)
    h2 = jnp.maximum(h2 + biases[_B2_OFF:_B2_OFF + SIZE_H2], 0.0)

    h3 = jnp.dot(w3_ref[...], h2.astype(w3_ref.dtype),
                 preferred_element_type=jnp.float32)                    # (6, TB)
    h3 = jnp.maximum(h3 + biases[_B3_OFF:_B3_OFF + SIZE_H3], 0.0)

    logits = jnp.dot(w4_ref[...], h3.astype(w4_ref.dtype),
                     preferred_element_type=jnp.float32)                # (2, TB)
    o_ref[...] = logits + biases[_B4_OFF:_B4_OFF + SIZE_H4]             # lane-dense store


def _round_up(v, m):
    return ((v + m - 1) // m) * m


def _pick_tile(b, block_batch):
    """Largest lane tile (multiple of 128, capped) that still leaves >=2 grid steps."""
    if b <= 128:
        return b                                   # single full-array tile
    splits = 4 if b >= 4 * 128 else 2              # v7x: give both TCs >=1-2 steps
    tb = _round_up(pl.cdiv(b, splits), 128)
    return max(128, min(block_batch, tb))


def _pack_biases(params):
    buf = jnp.zeros((_BIAS_PACK, 1), jnp.float32)
    for off, name, size in ((_B1_OFF, "b1", SIZE_H1), (_B2_OFF, "b2", SIZE_H2),
                            (_B3_OFF, "b3", SIZE_H3), (_B4_OFF, "b4", SIZE_H4)):
        buf = buf.at[off:off + size].set(
            params[name].astype(jnp.float32).reshape(size, 1))
    return buf


@functools.partial(jax.jit, static_argnames=("block_batch", "matmul_dtype"))
def adult_model_forward(x, params, *, block_batch=4096, matmul_dtype=jnp.bfloat16):
    """x: (B, F) f32.  params: PyTorch-oriented weights (out, in), biases (out, 1)."""
    b, f = x.shape
    tb = _pick_tile(b, block_batch)
    grid = (pl.cdiv(b, tb),)

    # Matmul operands in bf16 (fp8/e4m3 possible on v7x via matmul_dtype);
    # x itself streams in f32 and is cast inside the kernel (no extra HBM pass).
    w1 = params["w1"].astype(matmul_dtype)
    w2 = params["w2"].astype(matmul_dtype)
    w3 = params["w3"].astype(matmul_dtype)
    w4 = params["w4"].astype(matmul_dtype)
    bias_buf = _pack_biases(params)

    def resident(shape):
        # Full-array block, constant index map -> fetched once, reused each step.
        return pl.BlockSpec(shape, lambda i: (0, 0))

    logits_t = pl.pallas_call(
        adult_mlp_kernel,
        out_shape=jax.ShapeDtypeStruct((SIZE_H4, b), jnp.float32),
        grid=grid,
        in_specs=[
            pl.BlockSpec((tb, f), lambda i: (i, 0)),    # x batch tile, natural layout
            resident(w1.shape), resident(w2.shape),
            resident(w3.shape), resident(w4.shape),
            resident(bias_buf.shape),
        ],
        out_specs=pl.BlockSpec((SIZE_H4, tb), lambda i: (0, i)),
        compiler_params=pltpu.CompilerParams(
            dimension_semantics=("parallel",)),
    )(x, w1, w2, w3, w4, bias_buf)

    # nn.Softmax(dim=0) is a global reduction over the batch, so it stays outside
    # the tiled kernel.  Reduce along the contiguous last axis of the lane-major
    # (2, B) logits, then transpose the tiny normalized result.
    return jax.nn.softmax(logits_t, axis=1).T                          # (B, 2)


def init_params(key, input_shape):
    """Deterministic nn.Linear-style init; weights in PyTorch (out, in) orientation."""
    def linear_init(k, fan_in, fan_out):
        kw, kb = jax.random.split(k)
        bound = 1.0 / jnp.sqrt(float(fan_in))
        wgt = jax.random.uniform(kw, (fan_out, fan_in), jnp.float32, -bound, bound)
        bia = jax.random.uniform(kb, (fan_out, 1), jnp.float32, -bound, bound)
        return wgt, bia

    k1, k2, k3, k4 = jax.random.split(key, 4)
    w1, b1 = linear_init(k1, input_shape, SIZE_H1)
    w2, b2 = linear_init(k2, SIZE_H1, SIZE_H2)
    w3, b3 = linear_init(k3, SIZE_H2, SIZE_H3)
    w4, b4 = linear_init(k4, SIZE_H3, SIZE_H4)
    return {"w1": w1, "b1": b1, "w2": w2, "b2": b2,
            "w3": w3, "b3": b3, "w4": w4, "b4": b4}


def reference_forward(x, params, matmul_dtype=jnp.bfloat16):
    """Pure-JAX mirror of the PyTorch module using the same compute dtypes."""
    def dense(h, wgt, bia):
        return jnp.dot(h.astype(matmul_dtype), wgt.astype(matmul_dtype).T,
                       preferred_element_type=jnp.float32) + bia.reshape(1, -1)

    h = jnp.maximum(dense(x, params["w1"], params["b1"]), 0.0)
    h = jnp.maximum(dense(h, params["w2"], params["b2"]), 0.0)
    h = jnp.maximum(dense(h, params["w3"], params["b3"]), 0.0)
    logits = dense(h, params["w4"], params["b4"])
    return jax.nn.softmax(logits, axis=0)   # dim=0, as in the PyTorch module


if __name__ == "__main__":
    INPUT_SHAPE = 13    # Adult-dataset-style feature count
    BATCH = 1024        # -> 4 lane tiles of 256: exercises grid + megacore split

    key = jax.random.PRNGKey(0)
    kx, kp = jax.random.split(key)
    x = jax.random.normal(kx, (BATCH, INPUT_SHAPE), jnp.float32)
    params = init_params(kp, INPUT_SHAPE)

    out = jax.block_until_ready(adult_model_forward(x, params))
    ref = reference_forward(x, params)

    assert out.shape == (BATCH, SIZE_H4)
    assert jnp.allclose(out, ref, atol=2e-5, rtol=1e-3), "mismatch vs JAX reference"
    # columns of a dim=0 softmax sum to 1 over the batch axis
    assert jnp.allclose(jnp.sum(out, axis=0), jnp.ones((SIZE_H4,)), atol=1e-4)

    print("KERNEL_OK")
</pallas_src>

<mosaic_0001>
module attributes {stable_mosaic.version = 11 : i64} {
  func.func @adult_mlp_kernel(%arg0: i32, %arg1: memref<256x13xf32, #tpu.memory_space<vmem>>, %arg2: memref<25x13xbf16, #tpu.memory_space<vmem>>, %arg3: memref<12x25xbf16, #tpu.memory_space<vmem>>, %arg4: memref<6x12xbf16, #tpu.memory_space<vmem>>, %arg5: memref<2x6xbf16, #tpu.memory_space<vmem>>, %arg6: memref<64x1xf32, #tpu.memory_space<vmem>>, %arg7: memref<2x256xf32, #tpu.memory_space<vmem>>) attributes {dimension_semantics = [#tpu.dimension_semantics<parallel>], iteration_bounds = array<i64: 4>, scalar_prefetch = 0 : i64, scratch_operands = 0 : i64, tpu.core_type = #tpu.core_type<tc>, window_params = [{transform_indices = @transform_0, window_bounds = array<i64: 256, 13>}, {pipeline_mode = #tpu.pipeline_mode<synchronous>, transform_indices = @transform_1, window_bounds = array<i64: 25, 13>}, {pipeline_mode = #tpu.pipeline_mode<synchronous>, transform_indices = @transform_2, window_bounds = array<i64: 12, 25>}, {pipeline_mode = #tpu.pipeline_mode<synchronous>, transform_indices = @transform_3, window_bounds = array<i64: 6, 12>}, {pipeline_mode = #tpu.pipeline_mode<synchronous>, transform_indices = @transform_4, window_bounds = array<i64: 2, 6>}, {pipeline_mode = #tpu.pipeline_mode<synchronous>, transform_indices = @transform_5, window_bounds = array<i64: 64, 1>}, {transform_indices = @transform_6, window_bounds = array<i64: 2, 256>}]} {
    %c0 = arith.constant 0 : index
    %c0_0 = arith.constant 0 : index
    %0 = vector.load %arg1[%c0, %c0_0] : memref<256x13xf32, #tpu.memory_space<vmem>>, vector<256x13xf32>
    %1 = arith.truncf %0 : vector<256x13xf32> to vector<256x13xbf16>
    %c0_1 = arith.constant 0 : index
    %c0_2 = arith.constant 0 : index
    %2 = vector.load %arg6[%c0_1, %c0_2] : memref<64x1xf32, #tpu.memory_space<vmem>>, vector<64x1xf32>
    %c0_3 = arith.constant 0 : index
    %c0_4 = arith.constant 0 : index
    %3 = vector.load %arg2[%c0_3, %c0_4] : memref<25x13xbf16, #tpu.memory_space<vmem>>, vector<25x13xbf16>
    %cst = arith.constant dense<0.000000e+00> : vector<25x256xf32>
    %4 = tpu.matmul %3, %1, %cst {dimension_numbers = #tpu.dot_dimension_numbers<[1], [1], [0], [0], [0, 0, 1, 0], [], []>} : vector<25x13xbf16>, vector<256x13xbf16>, vector<25x256xf32> -> vector<25x256xf32>
    %5 = vector.extract_strided_slice %2 {offsets = [0, 0], sizes = [25, 1], strides = [1, 1]} : vector<64x1xf32> to vector<25x1xf32>
    %6 = vector.broadcast %5 : vector<25x1xf32> to vector<25x256xf32>
    %7 = arith.addf %4, %6 : vector<25x256xf32>
    %cst_5 = arith.constant 0.000000e+00 : f32
    %8 = vector.broadcast %cst_5 : f32 to vector<25x256xf32>
    %9 = arith.maximumf %7, %8 : vector<25x256xf32>
    %c0_6 = arith.constant 0 : index
    %c0_7 = arith.constant 0 : index
    %10 = vector.load %arg3[%c0_6, %c0_7] : memref<12x25xbf16, #tpu.memory_space<vmem>>, vector<12x25xbf16>
    %11 = arith.truncf %9 : vector<25x256xf32> to vector<25x256xbf16>
    %cst_8 = arith.constant dense<0.000000e+00> : vector<12x256xf32>
    %12 = tpu.matmul %10, %11, %cst_8 {dimension_numbers = #tpu.dot_dimension_numbers<[1], [0], [0], [1], [0, 0, 1, 1], [], []>} : vector<12x25xbf16>, vector<25x256xbf16>, vector<12x256xf32> -> vector<12x256xf32>
    %13 = vector.extract_strided_slice %2 {offsets = [32, 0], sizes = [12, 1], strides = [1, 1]} : vector<64x1xf32> to vector<12x1xf32>
    %14 = vector.broadcast %13 : vector<12x1xf32> to vector<12x256xf32>
    %15 = arith.addf %12, %14 : vector<12x256xf32>
    %cst_9 = arith.constant 0.000000e+00 : f32
    %16 = vector.broadcast %cst_9 : f32 to vector<12x256xf32>
    %17 = arith.maximumf %15, %16 : vector<12x256xf32>
    %c0_10 = arith.constant 0 : index
    %c0_11 = arith.constant 0 : index
    %18 = vector.load %arg4[%c0_10, %c0_11] : memref<6x12xbf16, #tpu.memory_space<vmem>>, vector<6x12xbf16>
    %19 = arith.truncf %17 : vector<12x256xf32> to vector<12x256xbf16>
    %cst_12 = arith.constant dense<0.000000e+00> : vector<6x256xf32>
    %20 = tpu.matmul %18, %19, %cst_12 {dimension_numbers = #tpu.dot_dimension_numbers<[1], [0], [0], [1], [0, 0, 1, 1], [], []>} : vector<6x12xbf16>, vector<12x256xbf16>, vector<6x256xf32> -> vector<6x256xf32>
    %21 = vector.extract_strided_slice %2 {offsets = [48, 0], sizes = [6, 1], strides = [1, 1]} : vector<64x1xf32> to vector<6x1xf32>
    %22 = vector.broadcast %21 : vector<6x1xf32> to vector<6x256xf32>
    %23 = arith.addf %20, %22 : vector<6x256xf32>
    %cst_13 = arith.constant 0.000000e+00 : f32
    %24 = vector.broadcast %cst_13 : f32 to vector<6x256xf32>
    %25 = arith.maximumf %23, %24 : vector<6x256xf32>
    %c0_14 = arith.constant 0 : index
    %c0_15 = arith.constant 0 : index
    %26 = vector.load %arg5[%c0_14, %c0_15] : memref<2x6xbf16, #tpu.memory_space<vmem>>, vector<2x6xbf16>
    %27 = arith.truncf %25 : vector<6x256xf32> to vector<6x256xbf16>
    %cst_16 = arith.constant dense<0.000000e+00> : vector<2x256xf32>
    %28 = tpu.matmul %26, %27, %cst_16 {dimension_numbers = #tpu.dot_dimension_numbers<[1], [0], [0], [1], [0, 0, 1, 1], [], []>} : vector<2x6xbf16>, vector<6x256xbf16>, vector<2x256xf32> -> vector<2x256xf32>
    %29 = vector.extract_strided_slice %2 {offsets = [56, 0], sizes = [2, 1], strides = [1, 1]} : vector<64x1xf32> to vector<2x1xf32>
    %30 = vector.broadcast %29 : vector<2x1xf32> to vector<2x256xf32>
    %31 = arith.addf %28, %30 : vector<2x256xf32>
    %c0_17 = arith.constant 0 : index
    %c0_18 = arith.constant 0 : index
    %32 = vector.load %arg7[%c0_17, %c0_18] : memref<2x256xf32, #tpu.memory_space<vmem>>, vector<2x256xf32>
    tpu.vector_store %arg7[%c0_17, %c0_18], %31 {strides = array<i32>} : memref<2x256xf32, #tpu.memory_space<vmem>>, vector<2x256xf32>,
    return
  }
  func.func @transform_0(%arg0: i32) -> (i32, i32) {
    %c0_i32 = arith.constant 0 : i32
    %c0_i32_0 = arith.constant 0 : i32
    return %arg0, %c0_i32 : i32, i32
  }
  func.func @transform_1(%arg0: i32) -> (i32, i32) {
    %c0_i32 = arith.constant 0 : i32
    %c0_i32_0 = arith.constant 0 : i32
    %c0_i32_1 = arith.constant 0 : i32
    return %c0_i32, %c0_i32_0 : i32, i32
  }
  func.func @transform_2(%arg0: i32) -> (i32, i32) {
    %c0_i32 = arith.constant 0 : i32
    %c0_i32_0 = arith.constant 0 : i32
    %c0_i32_1 = arith.constant 0 : i32
    return %c0_i32, %c0_i32_0 : i32, i32
  }
  func.func @transform_3(%arg0: i32) -> (i32, i32) {
    %c0_i32 = arith.constant 0 : i32
    %c0_i32_0 = arith.constant 0 : i32
    %c0_i32_1 = arith.constant 0 : i32
    return %c0_i32, %c0_i32_0 : i32, i32
  }
  func.func @transform_4(%arg0: i32) -> (i32, i32) {
    %c0_i32 = arith.constant 0 : i32
    %c0_i32_0 = arith.constant 0 : i32
    %c0_i32_1 = arith.constant 0 : i32
    return %c0_i32, %c0_i32_0 : i32, i32
  }
  func.func @transform_5(%arg0: i32) -> (i32, i32) {
    %c0_i32 = arith.constant 0 : i32
    %c0_i32_0 = arith.constant 0 : i32
    %c0_i32_1 = arith.constant 0 : i32
    return %c0_i32, %c0_i32_0 : i32, i32
  }
  func.func @transform_6(%arg0: i32) -> (i32, i32) {
    %c0_i32 = arith.constant 0 : i32
    %c0_i32_0 = arith.constant 0 : i32
    return %c0_i32, %arg0 : i32, i32
  }
}

</mosaic_0001>

<llo_original>
// kernel: adult_model_forward.1
$region0: #{adult_model_forward.1}
  #allocation0 [shape = 'u32[]', space=smem, size = 0x4, offset = 0x4, fixed_abs, tag = 'smem constant byte address 0x4 - core index']
  #allocation1 [shape = 'u32[72,128]{1,0:T(1,128)}', space=vmem, size = 0x9000, scoped, tag = 'internal scratch']
  %s0 = inlined_call_operand.vmem [shape: f32[1024,13], index: 0, kind: input, shape index: {}]
  %s1 = inlined_call_operand.vmem [shape: bf16[25,13], index: 1, kind: input, shape index: {}]
  %s2 = inlined_call_operand.vmem [shape: bf16[12,25], index: 2, kind: input, shape index: {}]
  %s3 = inlined_call_operand.vmem [shape: bf16[6,12], index: 3, kind: input, shape index: {}]
  %s4 = inlined_call_operand.vmem [shape: bf16[2,6], index: 4, kind: input, shape index: {}]
  %s5 = inlined_call_operand.vmem [shape: f32[64,1], index: 5, kind: input, shape index: {}]
  %s6 = inlined_call_operand.vmem [shape: f32[2,1024], index: 6, kind: output, shape index: {}]
  %s7 = sld [smem:[#allocation0]]
  $region57: #{adult_model_forward.1} parent=0
    _
  %s9 = ssub.s32 1, %s7
  %s10 = scalar_select 0, %s9, %s7
  loop: start=0, step=1, limit=6
  $region2: #{adult_model_forward.1} parent=0 // loop_pre_header
    _
  $region3: #{adult_model_forward.1} parent=0 // loop_header
    %s12 = sphi 0, %s16
    %p13 = scmp.ge.s32.totalorder %s12, 6
    %s22 = sphi 0, %s24
    %s25 = sphi 0, %s22
    %s26 = sphi 0, %s25
    %s42 = sphi 0, %s26
    %s46 = sphi 0, %s46
    %s48 = sphi 0, %s46
    %s49 = sphi 0, %s48
    %s63 = sphi 0, %s49
    %s67 = sphi 0, %s67
    %s69 = sphi 0, %s67
    %s70 = sphi 0, %s69
    %s84 = sphi 0, %s70
    %s88 = sphi 0, %s88
    %s90 = sphi 0, %s88
    %s91 = sphi 0, %s90
    %s105 = sphi 0, %s91
    %s109 = sphi 0, %s109
    %s111 = sphi 0, %s109
    %s112 = sphi 0, %s111
    %s126 = sphi 0, %s112
    %s130 = sphi 0, %s130
    %s132 = sphi 0, %s130
    %s133 = sphi 0, %s132
    %s147 = sphi 0, %s133
    %s153 = sphi 0, %s155
    %s156 = sphi 0, %s153
    %s157 = sphi 0, %s156
    %s173 = sphi 0, %s157
  $region4: #{adult_model_forward.1} parent=0 // loop_header_branch
    %15 = sbr.rel (%p13) target = $region8
  $region5: #{adult_model_forward.1} parent=0 // loop_body
    %s17 = ssub.s32 %s12, 1
    %s18 = ssub.s32 %s12, 2
    %s19 = sadd.s32 %s12, 1
    %s20 = ssub.s32 %s12, %s19
    %p21 = scmp.eq.s32.totalorder %s20, 0
    %s23 = sadd.s32 %s22, 1
    %s24 = scalar_select %p21, %s22, %s23
    %p27 = pneg %p21
    %p28 = scmp.eq.s32.totalorder %s12, 3
    %p29 = por %p27, %p28
    %p30 = scmp.ne.s32.totalorder %s22, %s25
    %p31 = scmp.eq.s32.totalorder %s12, 0
    %p32 = por %p30, %p31
    %p33 = scmp.ne.s32.totalorder %s22, %s25
    %p34 = scmp.eq.s32.totalorder %s17, 3
    %p35 = por %p33, %p34
    %p36 = scmp.ne.s32.totalorder %s25, %s26
    %p37 = scmp.eq.s32.totalorder %s17, 0
    %p38 = por %p36, %p37
    %p39 = scmp.ne.s32.totalorder %s25, %s26
    %p40 = scmp.eq.s32.totalorder %s18, 3
    %p41 = por %p39, %p40
    %p43 = scmp.ne.s32.totalorder %s26, %s42
    %p44 = scmp.eq.s32.totalorder %s18, 0
    %p45 = por %p43, %p44
    %s47 = sadd.s32 %s46, 1
    %p50 = scmp.eq.s32.totalorder %s12, 3
    %p51 = scmp.ne.s32.totalorder %s46, %s48
    %p52 = scmp.eq.s32.totalorder %s12, 0
    %p53 = por %p51, %p52
    %p54 = scmp.ne.s32.totalorder %s46, %s48
    %p55 = scmp.eq.s32.totalorder %s17, 3
    %p56 = por %p54, %p55
    %p57 = scmp.ne.s32.totalorder %s48, %s49
    %p58 = scmp.eq.s32.totalorder %s17, 0
    %p59 = por %p57, %p58
    %p60 = scmp.ne.s32.totalorder %s48, %s49
    %p61 = scmp.eq.s32.totalorder %s18, 3
    %p62 = por %p60, %p61
    %p64 = scmp.ne.s32.totalorder %s49, %s63
    %p65 = scmp.eq.s32.totalorder %s18, 0
    %p66 = por %p64, %p65
    %s68 = sadd.s32 %s67, 1
    %p71 = scmp.eq.s32.totalorder %s12, 3
    %p72 = scmp.ne.s32.totalorder %s67, %s69
    %p73 = scmp.eq.s32.totalorder %s12, 0
    %p74 = por %p72, %p73
    %p75 = scmp.ne.s32.totalorder %s67, %s69
    %p76 = scmp.eq.s32.totalorder %s17, 3
    %p77 = por %p75, %p76
    %p78 = scmp.ne.s32.totalorder %s69, %s70
    %p79 = scmp.eq.s32.totalorder %s17, 0
    %p80 = por %p78, %p79
    %p81 = scmp.ne.s32.totalorder %s69, %s70
    %p82 = scmp.eq.s32.totalorder %s18, 3
    %p83 = por %p81, %p82
    %p85 = scmp.ne.s32.totalorder %s70, %s84
    %p86 = scmp.eq.s32.totalorder %s18, 0
    %p87 = por %p85, %p86
    %s89 = sadd.s32 %s88, 1
    %p92 = scmp.eq.s32.totalorder %s12, 3
    %p93 = scmp.ne.s32.totalorder %s88, %s90
    %p94 = scmp.eq.s32.totalorder %s12, 0
    %p95 = por %p93, %p94
    %p96 = scmp.ne.s32.totalorder %s88, %s90
    %p97 = scmp.eq.s32.totalorder %s17, 3
    %p98 = por %p96, %p97
    %p99 = scmp.ne.s32.totalorder %s90, %s91
    %p100 = scmp.eq.s32.totalorder %s17, 0
    %p101 = por %p99, %p100
    %p102 = scmp.ne.s32.totalorder %s90, %s91
    %p103 = scmp.eq.s32.totalorder %s18, 3
    %p104 = por %p102, %p103
    %p106 = scmp.ne.s32.totalorder %s91, %s105
    %p107 = scmp.eq.s32.totalorder %s18, 0
    %p108 = por %p106, %p107
    %s110 = sadd.s32 %s109, 1
    %p113 = scmp.eq.s32.totalorder %s12, 3
    %p114 = scmp.ne.s32.totalorder %s109, %s111
    %p115 = scmp.eq.s32.totalorder %s12, 0
    %p116 = por %p114, %p115
    %p117 = scmp.ne.s32.totalorder %s109, %s111
    %p118 = scmp.eq.s32.totalorder %s17, 3
    %p119 = por %p117, %p118
    %p120 = scmp.ne.s32.totalorder %s111, %s112
    %p121 = scmp.eq.s32.totalorder %s17, 0
    %p122 = por %p120, %p121
    %p123 = scmp.ne.s32.totalorder %s111, %s112
    %p124 = scmp.eq.s32.totalorder %s18, 3
    %p125 = por %p123, %p124
    %p127 = scmp.ne.s32.totalorder %s112, %s126
    %p128 = scmp.eq.s32.totalorder %s18, 0
    %p129 = por %p127, %p128
    %s131 = sadd.s32 %s130, 1
    %p134 = scmp.eq.s32.totalorder %s12, 3
    %p135 = scmp.ne.s32.totalorder %s130, %s132
    %p136 = scmp.eq.s32.totalorder %s12, 0
    %p137 = por %p135, %p136
    %p138 = scmp.ne.s32.totalorder %s130, %s132
    %p139 = scmp.eq.s32.totalorder %s17, 3
    %p140 = por %p138, %p139
    %p141 = scmp.ne.s32.totalorder %s132, %s133
    %p142 = scmp.eq.s32.totalorder %s17, 0
    %p143 = por %p141, %p142
    %p144 = scmp.ne.s32.totalorder %s132, %s133
    %p145 = scmp.eq.s32.totalorder %s18, 3
    %p146 = por %p144, %p145
    %p148 = scmp.ne.s32.totalorder %s133, %s147
    %p149 = scmp.eq.s32.totalorder %s18, 0
    %p150 = por %p148, %p149
    %s151 = ssub.s32 %s12, %s19
    %p152 = scmp.eq.s32.totalorder %s151, 0
    %s154 = sadd.s32 %s153, 1
    %s155 = scalar_select %p152, %s153, %s154
    %p158 = pneg %p152
    %p159 = scmp.eq.s32.totalorder %s12, 3
    %p160 = por %p158, %p159
    %p161 = scmp.ne.s32.totalorder %s153, %s156
    %p162 = scmp.eq.s32.totalorder %s12, 0
    %p163 = por %p161, %p162
    %p164 = scmp.ne.s32.totalorder %s153, %s156
    %p165 = scmp.eq.s32.totalorder %s17, 3
    %p166 = por %p164, %p165
    %p167 = scmp.ne.s32.totalorder %s156, %s157
    %p168 = scmp.eq.s32.totalorder %s17, 0
    %p169 = por %p167, %p168
    %p170 = scmp.ne.s32.totalorder %s156, %s157
    %p171 = scmp.eq.s32.totalorder %s18, 3
    %p172 = por %p170, %p171
    %p174 = scmp.ne.s32.totalorder %s157, %s173
    %p175 = scmp.eq.s32.totalorder %s18, 0
    %p176 = por %p174, %p175
    %p177 = scmp.le.s32.totalorder 1, %s12
    %p178 = scmp.lt.s32.totalorder %s12, 5
    %p179 = pnand %p177, %p178
    %p180 = pneg %p179
    // Predicated region
    $region9: #{adult_model_forward.1} parent=5 // pred_check
      _
    $region10: #{adult_model_forward.1} parent=5 // pred_check_branch
      %182 = sbr.rel (%p179) target = $region12
    $region11: #{adult_model_forward.1} parent=5 // pred_region
      %s183 = ssub.s32 %s12, 1
      // Predicated region
      $region13: #{adult_model_forward.1} parent=11 // pred_check
        %p184 = pneg %p59
      $region14: #{adult_model_forward.1} parent=11 // pred_check_branch
        %186 = sbr.rel (%p184) target = $region16
      $region15: #{adult_model_forward.1} parent=11 // pred_region
        _
      $region16: #{adult_model_forward.1} parent=11 // pred_fallthru
        _
      // Predicated region
      $region17: #{adult_model_forward.1} parent=11 // pred_check
        %p187 = pneg %p80
      $region18: #{adult_model_forward.1} parent=11 // pred_check_branch
        %189 = sbr.rel (%p187) target = $region20
      $region19: #{adult_model_forward.1} parent=11 // pred_region
        _
      $region20: #{adult_model_forward.1} parent=11 // pred_fallthru
        _
      // Predicated region
      $region21: #{adult_model_forward.1} parent=11 // pred_check
        %p190 = pneg %p101
      $region22: #{adult_model_forward.1} parent=11 // pred_check_branch
        %192 = sbr.rel (%p190) target = $region24
      $region23: #{adult_model_forward.1} parent=11 // pred_region
        _
      $region24: #{adult_model_forward.1} parent=11 // pred_fallthru
        _
      // Predicated region
      $region25: #{adult_model_forward.1} parent=11 // pred_check
        %p193 = pneg %p122
      $region26: #{adult_model_forward.1} parent=11 // pred_check_branch
        %195 = sbr.rel (%p193) target = $region28
      $region27: #{adult_model_forward.1} parent=11 // pred_region
        _
      $region28: #{adult_model_forward.1} parent=11 // pred_fallthru
        _
      // Predicated region
      $region29: #{adult_model_forward.1} parent=11 // pred_check
        %p196 = pneg %p143
      $region30: #{adult_model_forward.1} parent=11 // pred_check_branch
        %198 = sbr.rel (%p196) target = $region32
      $region31: #{adult_model_forward.1} parent=11 // pred_region
        _
      $region32: #{adult_model_forward.1} parent=11 // pred_fallthru
        _
    $region12: #{adult_model_forward.1} parent=5 // pred_fallthru
      _
    %p199 = scmp.lt.s32.totalorder %s12, 4
    // Predicated region
    $region33: #{adult_model_forward.1} parent=5 // pred_check
      %p200 = pneg %p199
    $region34: #{adult_model_forward.1} parent=5 // pred_check_branch
      %202 = sbr.rel (%p200) target = $region36
    $region35: #{adult_model_forward.1} parent=5 // pred_region
      // Predicated region
      $region37: #{adult_model_forward.1} parent=35 // pred_check
        %p203 = pneg %p32
      $region38: #{adult_model_forward.1} parent=35 // pred_check_branch
        %205 = sbr.rel (%p203) target = $region40
      $region39: #{adult_model_forward.1} parent=35 // pred_region
        %s206 = smul.u32 32, %s12
        %p207 = scmp.lt.s32.totalorder %s206, 127
        %s208 = scalar_select %p207, %s206, 127
        %s209 = smul.addr %s208, 8
        %s210 = scalar_lea.vmem %s0, %s209
        %s211 = smul.u32 32, %s12
      $region40: #{adult_model_forward.1} parent=35 // pred_fallthru
        _
    $region36: #{adult_model_forward.1} parent=5 // pred_fallthru
      _
    %p212 = scmp.le.s32.totalorder 1, %s12
    %p213 = scmp.lt.s32.totalorder %s12, 5
    %p214 = pnand %p212, %p213
    %p215 = pneg %p214
    // Predicated region
    $region41: #{adult_model_forward.1} parent=5 // pred_check
      _
    $region42: #{adult_model_forward.1} parent=5 // pred_check_branch
      %217 = sbr.rel (%p214) target = $region44
    $region43: #{adult_model_forward.1} parent=5 // pred_region
      %s218 = ssub.s32 %s12, 1
      %s219 = smul.u32 32, %s17
      %p220 = scmp.lt.s32.totalorder %s219, 127
      %s221 = scalar_select %p220, %s219, 127
      %s222 = smul.addr %s221, 8
      %s223 = scalar_lea.vmem %s0, %s222
      %p224 = pneg %p38
      %p225 = pneg %p35
      %p226 = pneg %p59
      %p227 = pneg %p56
      %p228 = pneg %p80
      %p229 = pneg %p77
      %p230 = pneg %p101
      %p231 = pneg %p98
      %p232 = pneg %p122
      %p233 = pneg %p119
      %p234 = pneg %p143
      %p235 = pneg %p140
      %p236 = pneg %p169
      %p237 = pneg %p166
      %s238 = smul.u32 2, %s17
      %p239 = scmp.lt.s32.totalorder %s238, 7
      %s240 = scalar_select %p239, %s238, 7
      %s241 = smul.addr %s240, 2
      %s242 = scalar_lea.vmem %s6, %s241
      %s243 = smul.u32 32, %s17
      %p244 = scmp.lt.s32.totalorder %s243, 127
      %s245 = scalar_select %p244, %s243, 127
      %s246 = smul.addr %s245, 8
      %s247 = scalar_lea.vmem %s0, %s246
      %s248 = smul.u32 32, %s17
      %s249 = smul.u32 2, %s17
      %p250 = scmp.lt.s32.totalorder %s249, 7
      %s251 = scalar_select %p250, %s249, 7
      %s252 = smul.addr %s251, 2
      %s253 = scalar_lea.vmem %s6, %s252
      %s254 = smul.u32 2, %s17
      %v256 = vld [vmem:[%s247] sm:$0xff]
      %v257 = vld [vmem:[%s247 + $0x8] sm:$0xff]
      %v258 = vld [vmem:[%s247 + $0x10] sm:$0xff]
      %v259 = vld [vmem:[%s247 + $0x18] sm:$0xff]
      %v260 = vld [vmem:[%s247 + $0x20] sm:$0xff]
      %v261 = vld [vmem:[%s247 + $0x28] sm:$0xff]
      %v262 = vld [vmem:[%s247 + $0x30] sm:$0xff]
      %v263 = vld [vmem:[%s247 + $0x38] sm:$0xff]
      %v264 = vld [vmem:[%s247 + $0x40] sm:$0xff]
      %v265 = vld [vmem:[%s247 + $0x48] sm:$0xff]
      %v266 = vld [vmem:[%s247 + $0x50] sm:$0xff]
      %v267 = vld [vmem:[%s247 + $0x58] sm:$0xff]
      %v268 = vld [vmem:[%s247 + $0x60] sm:$0xff]
      %v269 = vld [vmem:[%s247 + $0x68] sm:$0xff]
      %v270 = vld [vmem:[%s247 + $0x70] sm:$0xff]
      %v271 = vld [vmem:[%s247 + $0x78] sm:$0xff]
      %v272 = vld [vmem:[%s247 + $0x80] sm:$0xff]
      %v273 = vld [vmem:[%s247 + $0x88] sm:$0xff]
      %v274 = vld [vmem:[%s247 + $0x90] sm:$0xff]
      %v275 = vld [vmem:[%s247 + $0x98] sm:$0xff]
      %v276 = vld [vmem:[%s247 + $0xa0] sm:$0xff]
      %v277 = vld [vmem:[%s247 + $0xa8] sm:$0xff]
      %v278 = vld [vmem:[%s247 + $0xb0] sm:$0xff]
      %v279 = vld [vmem:[%s247 + $0xb8] sm:$0xff]
      %v280 = vld [vmem:[%s247 + $0xc0] sm:$0xff]
      %v281 = vld [vmem:[%s247 + $0xc8] sm:$0xff]
      %v282 = vld [vmem:[%s247 + $0xd0] sm:$0xff]
      %v283 = vld [vmem:[%s247 + $0xd8] sm:$0xff]
      %v284 = vld [vmem:[%s247 + $0xe0] sm:$0xff]
      %v285 = vld [vmem:[%s247 + $0xe8] sm:$0xff]
      %v286 = vld [vmem:[%s247 + $0xf0] sm:$0xff]
      %v287 = vld [vmem:[%s247 + $0xf8] sm:$0xff]
      %v288 = vpack.c.bf16 %v257, %v256
      %v289 = vpack.c.bf16 %v259, %v258
      %v290 = vpack.c.bf16 %v261, %v260
      %v291 = vpack.c.bf16 %v263, %v262
      %v292 = vpack.c.bf16 %v265, %v264
      %v293 = vpack.c.bf16 %v267, %v266
      %v294 = vpack.c.bf16 %v269, %v268
      %v295 = vpack.c.bf16 %v271, %v270
      %v296 = vpack.c.bf16 %v273, %v272
      %v297 = vpack.c.bf16 %v275, %v274
      %v298 = vpack.c.bf16 %v277, %v276
      %v299 = vpack.c.bf16 %v279, %v278
      %v300 = vpack.c.bf16 %v281, %v280
      %v301 = vpack.c.bf16 %v283, %v282
      %v302 = vpack.c.bf16 %v285, %v284
      %v303 = vpack.c.bf16 %v287, %v286
      %v304 = vld [vmem:[%s5] sm:$0xff]
      %v305 = vld [vmem:[%s5 + $0x8] sm:$0xff]
      %v306 = vld [vmem:[%s5 + $0x10] sm:$0xff]
      %v307 = vld [vmem:[%s5 + $0x18] sm:$0xff]
      %v308 = vld [vmem:[%s5 + $0x20] sm:$0xff]
      %v309 = vld [vmem:[%s5 + $0x28] sm:$0xff]
      %v310 = vld [vmem:[%s5 + $0x30] sm:$0xff]
      %v311 = vld [vmem:[%s5 + $0x38] sm:$0xff]
      %v312 = vld [vmem:[%s1] sm:$0xf]
      %v313 = vld [vmem:[%s1 + $0x4] sm:$0xf]
      %v314 = vld [vmem:[%s1 + $0x8] sm:$0xf]
      %v315 = vld [vmem:[%s1 + $0xc] sm:$0x1]
      %317 = vset.pattern.permute.xlu0 0
      %318 = vperm.xlu0 %317, %v304
      %v319 = vpop.permute.xlu0 %318
      %322 = vset.pattern.permute.xlu0 0
      %323 = vperm.xlu0 %322, %v305
      %v324 = vpop.permute.xlu0 %323
      %327 = vset.pattern.permute.xlu0 0
      %328 = vperm.xlu0 %327, %v306
      %v329 = vpop.permute.xlu0 %328
      %332 = vset.pattern.permute.xlu0 0
      %333 = vperm.xlu0 %332, %v307
      %v334 = vpop.permute.xlu0 %333
      %v340 = vunpack.c.l.b16 %v312
      %v341 = vunpack.c.l.b16 %v313
      %v342 = vunpack.c.l.b16 %v314
      %v343 = vunpack.c.l.b16 %v315
      %v344 = vpack.c.b16 %v341, %v340
      %v345 = vpack.c.b16 %v343, %v342
      %vm346 = vcmask 105472
      %v348 = vsel %vm346, %v344, 0
      %v351 = vsel %vm346, %v345, 0
      %v354 = vsel %vm346, %v288, 0
      %v357 = vsel %vm346, %v289, 0
      %v360 = vsel %vm346, %v290, 0
      %v363 = vsel %vm346, %v291, 0
      %v366 = vsel %vm346, %v292, 0
      %v369 = vsel %vm346, %v293, 0
      %v372 = vsel %vm346, %v294, 0
      %v375 = vsel %vm346, %v295, 0
      %v378 = vsel %vm346, %v296, 0
      %v381 = vsel %vm346, %v297, 0
      %v384 = vsel %vm346, %v298, 0
      %v387 = vsel %vm346, %v299, 0
      %v390 = vsel %vm346, %v300, 0
      %v393 = vsel %vm346, %v301, 0
      %v396 = vsel %vm346, %v302, 0
      %v399 = vsel %vm346, %v303, 0
      %401 = vmatpush.bf16.xpose.msra.mxu0 %v375
      %402 = vmatpush.bf16.xpose.msra.mxu0 %v372
      %403 = vmatpush.bf16.xpose.msra.mxu0 %v369
      %404 = vmatpush.bf16.xpose.msra.mxu0 %v366
      %405 = vmatpush.bf16.xpose.msra.mxu0 %v363
      %406 = vmatpush.bf16.xpose.msra.mxu0 %v360
      %407 = vmatpush.bf16.xpose.msra.mxu0 %v357
      %408 = vmatpush.bf16.xpose.msra.mxu0 %v354
      %409 = vmatmul.bf16.gmra.mxu0 %v348
      %v410 = vpop.f32.mrf.mxu0
      %v411 = vadd.f32 %v319, %v410
      %v412 = vpop.f32.mrf.mxu0
      %v413 = vadd.f32 %v324, %v412
      %414 = vmatmul.bf16.gmra.mxu0 %v351
      %v415 = vpop.f32.mrf.mxu0
      %v416 = vadd.f32 %v329, %v415
      %v417 = vpop.f32.mrf.mxu0
      %v418 = vadd.f32 %v334, %v417
      %419 = vdwg.mxu0
      %420 = vmatpush.bf16.xpose.msra.mxu0 %v399
      %421 = vmatpush.bf16.xpose.msra.mxu0 %v396
      %422 = vmatpush.bf16.xpose.msra.mxu0 %v393
      %423 = vmatpush.bf16.xpose.msra.mxu0 %v390
      %424 = vmatpush.bf16.xpose.msra.mxu0 %v387
      %425 = vmatpush.bf16.xpose.msra.mxu0 %v384
      %426 = vmatpush.bf16.xpose.msra.mxu0 %v381
      %427 = vmatpush.bf16.xpose.msra.mxu0 %v378
      %428 = vmatmul.bf16.gmra.mxu0 %v348
      %v429 = vpop.f32.mrf.mxu0
      %v430 = vadd.f32 %v319, %v429
      %v431 = vpop.f32.mrf.mxu0
      %v432 = vadd.f32 %v324, %v431
      %433 = vmatmul.bf16.gmra.mxu0 %v351
      %v434 = vpop.f32.mrf.mxu0
      %v435 = vadd.f32 %v329, %v434
      %v436 = vpop.f32.mrf.mxu0
      %v437 = vadd.f32 %v334, %v436
      %438 = vdwg.mxu0
      %v439 = vmax.f32 %v411, 0.0
      %v440 = vmax.f32 %v430, 0.0
      %v441 = vmax.f32 %v413, 0.0
      %v442 = vmax.f32 %v432, 0.0
      %v443 = vmax.f32 %v416, 0.0
      %v444 = vmax.f32 %v435, 0.0
      %v445 = vmax.f32 %v418, 0.0
      %v446 = vmax.f32 %v437, 0.0
      %v447 = vld [vmem:[%s2] sm:$0xf]
      %v448 = vld [vmem:[%s2 + $0x4] sm:$0x3]
      %v449 = vpack.c.bf16 %v441, %v439
      %v450 = vpack.c.bf16 %v442, %v440
      %v451 = vpack.c.bf16 %v445, %v443
      %v452 = vpack.c.bf16 %v446, %v444
      %454 = vset.pattern.permute.xlu0 0
      %455 = vperm.xlu0 %454, %v308
      %v456 = vpop.permute.xlu0 %455
      %459 = vset.pattern.permute.xlu0 0
      %460 = vperm.xlu0 %459, %v309
      %v461 = vpop.permute.xlu0 %460
      %v465 = vunpack.c.l.b16 %v447
      %v466 = vunpack.c.l.b16 %v448
      %v467 = vpack.c.b16 %v466, %v465
      %vm468 = vcmask 203776
      %v470 = vsel %vm468, %v467, 0
      %vm472 = vcmask 1043456
      %vm473 = vcmask 1044480
      %v474 = vsel %vm472, 4294967295, 65535
      %v475 = vsel %vm473, %v474, 0
      %v477 = vand.u32 %v451, %v475
      %v480 = vand.u32 %v452, %v475
      %482 = vmatpush.bf16.msra.mxu0 0
      %483 = vmatpush.bf16.msra.mxu0 0
      %484 = vmatpush.bf16.msra.mxu0 0
      %485 = vmatpush.bf16.msra.mxu0 0
      %486 = vmatpush.bf16.msra.mxu0 0
      %487 = vmatpush.bf16.msra.mxu0 0
      %488 = vmatpush.bf16.msra.mxu0 %v477
      %489 = vmatpush.bf16.msra.mxu0 %v449
      %490 = vmatmul.bf16.gmra.mxu0 %v470
      %v491 = vpop.f32.mrf.mxu0
      %v492 = vadd.f32 %v456, %v491
      %v493 = vpop.f32.mrf.mxu0
      %v494 = vadd.f32 %v461, %v493
      %495 = vdwg.mxu0
      %496 = vmatpush.bf16.msra.mxu0 0
      %497 = vmatpush.bf16.msra.mxu0 0
      %498 = vmatpush.bf16.msra.mxu0 0
      %499 = vmatpush.bf16.msra.mxu0 0
      %500 = vmatpush.bf16.msra.mxu0 0
      %501 = vmatpush.bf16.msra.mxu0 0
      %502 = vmatpush.bf16.msra.mxu0 %v480
      %503 = vmatpush.bf16.msra.mxu0 %v450
      %504 = vmatmul.bf16.gmra.mxu0 %v470
      %v505 = vpop.f32.mrf.mxu0
      %v506 = vadd.f32 %v456, %v505
      %v507 = vpop.f32.mrf.mxu0
      %v508 = vadd.f32 %v461, %v507
      %509 = vdwg.mxu0
      %v510 = vmax.f32 %v492, 0.0
      %v511 = vmax.f32 %v506, 0.0
      %v512 = vmax.f32 %v494, 0.0
      %v513 = vmax.f32 %v508, 0.0
      %v514 = vld [vmem:[%s3] sm:$0x7]
      %v515 = vpack.c.bf16 %v512, %v510
      %v516 = vpack.c.bf16 %v513, %v511
      %518 = vset.pattern.permute.xlu0 0
      %519 = vperm.xlu0 %518, %v310
      %v520 = vpop.permute.xlu0 %519
      %vm522 = vcmask 97280
      %v524 = vsel %vm522, %v514, 0
      %vm526 = vcmask 1045504
      %v528 = vsel %vm526, %v515, 0
      %v531 = vsel %vm526, %v516, 0
      %533 = vmatpush.bf16.msra.mxu0 0
      %534 = vmatpush.bf16.msra.mxu0 0
      %535 = vmatpush.bf16.msra.mxu0 0
      %536 = vmatpush.bf16.msra.mxu0 0
      %537 = vmatpush.bf16.msra.mxu0 0
      %538 = vmatpush.bf16.msra.mxu0 0
      %539 = vmatpush.bf16.msra.mxu0 0
      %540 = vmatpush.bf16.msra.mxu0 %v528
      %541 = vmatmul.bf16.gmra.mxu0 %v524
      %v542 = vpop.f32.mrf.mxu0
      %v543 = vadd.f32 %v520, %v542
      %v544 = vpop.f32.mrf.mxu0
      %545 = vdwg.mxu0
      %546 = vmatpush.bf16.msra.mxu0 0
      %547 = vmatpush.bf16.msra.mxu0 0
      %548 = vmatpush.bf16.msra.mxu0 0
      %549 = vmatpush.bf16.msra.mxu0 0
      %550 = vmatpush.bf16.msra.mxu0 0
      %551 = vmatpush.bf16.msra.mxu0 0
      %552 = vmatpush.bf16.msra.mxu0 0
      %553 = vmatpush.bf16.msra.mxu0 %v531
      %554 = vmatmul.bf16.gmra.mxu0 %v524
      %v555 = vpop.f32.mrf.mxu0
      %v556 = vadd.f32 %v520, %v555
      %v557 = vpop.f32.mrf.mxu0
      %558 = vdwg.mxu0
      %v559 = vmax.f32 %v543, 0.0
      %v560 = vmax.f32 %v556, 0.0
      %v561 = vld [vmem:[%s4] sm:$0x1]
      %v562 = vpack.c.bf16 %v559, %v559
      %v563 = vpack.c.bf16 %v560, %v560
      %565 = vset.pattern.permute.xlu0 0
      %566 = vperm.xlu0 %565, %v311
      %v567 = vpop.permute.xlu0 %566
      %vm569 = vcmask 48128
      %v571 = vsel %vm569, %v561, 0
      %vm573 = vcmask 1042432
      %v575 = vsel %vm573, %v562, 0
      %v578 = vsel %vm573, %v563, 0
      %580 = vmatpush.bf16.msra.mxu0 0
      %581 = vmatpush.bf16.msra.mxu0 0
      %582 = vmatpush.bf16.msra.mxu0 0
      %583 = vmatpush.bf16.msra.mxu0 0
      %584 = vmatpush.bf16.msra.mxu0 0
      %585 = vmatpush.bf16.msra.mxu0 0
      %586 = vmatpush.bf16.msra.mxu0 0
      %587 = vmatpush.bf16.msra.mxu0 %v575
      %588 = vmatmul.bf16.gmra.mxu0 %v571
      %v589 = vpop.f32.mrf.mxu0
      %v590 = vadd.f32 %v567, %v589
      %v591 = vpop.f32.mrf.mxu0
      %592 = vdwg.mxu0
      %593 = vmatpush.bf16.msra.mxu0 0
      %594 = vmatpush.bf16.msra.mxu0 0
      %595 = vmatpush.bf16.msra.mxu0 0
      %596 = vmatpush.bf16.msra.mxu0 0
      %597 = vmatpush.bf16.msra.mxu0 0
      %598 = vmatpush.bf16.msra.mxu0 0
      %599 = vmatpush.bf16.msra.mxu0 0
      %600 = vmatpush.bf16.msra.mxu0 %v578
      %601 = vmatmul.bf16.gmra.mxu0 %v571
      %v602 = vpop.f32.mrf.mxu0
      %v603 = vadd.f32 %v567, %v602
      %v604 = vpop.f32.mrf.mxu0
      %605 = vdwg.mxu0
      %v608 = vrot.slane %v603, 6
      %vm609 = vcmask 1041408
      %v610 = vsel %vm609, %v590, %v608
      %612 = vst [vmem:[%s253] sm:$0xf] %v610
      %s613 = smul.u32 2, %s17
      %p614 = scmp.lt.s32.totalorder %s613, 7
      %s615 = scalar_select %p614, %s613, 7
      %s616 = smul.addr %s615, 2
      %s617 = scalar_lea.vmem %s6, %s616
      // Predicated region
      $region45: #{adult_model_forward.1} parent=43 // pred_check
        %p618 = pneg %p166
      $region46: #{adult_model_forward.1} parent=43 // pred_check_branch
        %620 = sbr.rel (%p618) target = $region48
      $region47: #{adult_model_forward.1} parent=43 // pred_region
        %s621 = smul.u32 2, %s17
      $region48: #{adult_model_forward.1} parent=43 // pred_fallthru
        _
    $region44: #{adult_model_forward.1} parent=5 // pred_fallthru
      _
    %p622 = scmp.le.s32.totalorder 2, %s12
    // Predicated region
    $region49: #{adult_model_forward.1} parent=5 // pred_check
      %p623 = pneg %p622
    $region50: #{adult_model_forward.1} parent=5 // pred_check_branch
      %625 = sbr.rel (%p623) target = $region52
    $region51: #{adult_model_forward.1} parent=5 // pred_region
      %s626 = ssub.s32 %s12, 2
      // Predicated region
      $region53: #{adult_model_forward.1} parent=51 // pred_check
        %p627 = pneg %p172
      $region54: #{adult_model_forward.1} parent=51 // pred_check_branch
        %629 = sbr.rel (%p627) target = $region56
      $region55: #{adult_model_forward.1} parent=51 // pred_region
        %s630 = smul.u32 2, %s18
        %p631 = scmp.lt.s32.totalorder %s630, 7
        %s632 = scalar_select %p631, %s630, 7
        %s633 = smul.addr %s632, 2
        %s634 = scalar_lea.vmem %s6, %s633
      $region56: #{adult_model_forward.1} parent=51 // pred_fallthru
        _
    $region52: #{adult_model_forward.1} parent=5 // pred_fallthru
      _
  $region6: #{adult_model_forward.1} parent=0 // loop_footer
    %s16 = sadd.s32 1, %s12
  $region7: #{adult_model_forward.1} parent=0 // loop_footer_branch
    %11 = sbr.rel target = $region3
  $region8: #{adult_model_forward.1} parent=0 // loop_exit
    _

</llo_original>
